<compile_context>
chip_gen: v5e
topology: v5e:2x2
jax: 0.10.0
libtpu: 0.0.40
codegen_flags: <defaults>
</compile_context>

<pallas_src>
import functools

import jax
import jax.numpy as jnp
from jax.experimental import pallas as pl
from jax.experimental.pallas import tpu as pltpu

LN_EPS = 1e-5


def _sgu_kernel(x_ref, wv_ref, bv_ref, gamma_ref, beta_ref,
                wdense_ref, bdense_ref, wu_ref, bu_ref, o_ref, *, n_tokens):
    # x_ref block: (Bt * n_tokens, dim) — Bt batch elements flattened along rows.
    rows, d = x_ref.shape
    bt = rows // n_tokens

    x_bf = x_ref[...].astype(jnp.bfloat16)                  # bf16 MXU operands

    # ---- v branch (computed first to keep peak live tile size down) -----------
    v = jnp.dot(x_bf, wv_ref[...],
                preferred_element_type=jnp.float32) + bv_ref[...]     # (rows, d) f32

    # ---- single-pass LayerNorm over channels (f32 statistics) -----------------
    inv_d = 1.0 / d
    s1 = jnp.sum(v, axis=-1, keepdims=True)
    s2 = jnp.sum(v * v, axis=-1, keepdims=True)
    mean = s1 * inv_d
    var = s2 * inv_d - mean * mean
    vn = (v - mean) * jax.lax.rsqrt(var + LN_EPS)            # rsqrt -> EUP slot
    vn = vn * gamma_ref[...] + beta_ref[...]
    vn_bf = vn.astype(jnp.bfloat16)

    # ---- u branch --------------------------------------------------------------
    u = jnp.dot(x_bf, wu_ref[...],
                preferred_element_type=jnp.float32) + bu_ref[...]     # (rows, d) f32

    # ---- token mix per batch element + gate ------------------------------------
    w_dense = wdense_ref[...]          # (n, n) bf16
    bias = bdense_ref[...]             # (n, d) f32, already includes the "+1.0"
    for b in range(bt):                # static unroll; Bt is kept small (<= 16)
        lo = b * n_tokens
        vb = vn_bf[lo:lo + n_tokens, :]                               # (n, d)
        mixed = jnp.dot(w_dense, vb,
                        preferred_element_type=jnp.float32) + bias    # (n, d) f32
        o_ref[lo:lo + n_tokens, :] = (
            u[lo:lo + n_tokens, :] * mixed).astype(o_ref.dtype)


def _pick_batch_tile(batch, n_tokens):
    """Largest divisor of `batch` such that
       * rows = bt * n_tokens <= 512 (good MXU M-fill, bounded VMEM),
       * rows % 8 == 0 (sublane rule) unless the block spans the whole axis,
       * bt <= 16 (bounded static token-mix unroll)."""
    best = None
    for cand in range(1, batch + 1):
        if batch % cand:
            continue
        rows = cand * n_tokens
        if cand != batch and rows % 8 != 0:
            continue
        if rows <= 512 and cand <= 16:
            best = cand
    if best is None:
        best = batch                   # full-extent block is always layout-legal
    return best


def _vmem_limit_bytes(rows, n, d):
    f32, bf16 = 4, 2
    io = 2 * 2 * rows * d * f32                       # x + out, double-buffered
    weights = 2 * (2 * d * d * bf16 + n * n * bf16 + n * d * f32 + 4 * d * f32)
    live = 4 * rows * d * f32                         # v / vn / u intermediates
    est = 2 * (io + weights + live)
    return int(min(max(est, 32 * 1024 * 1024), 64 * 1024 * 1024))


def spatial_gating_unit(x, w_dup, b_dup, gamma, beta, w_dense, b_dense, *, bt=None):
    """x: (B, n_tokens, dim) f32. w_dup: (2*dim, dim) PyTorch-layout Linear weight."""
    B, n, d = x.shape
    if bt is None:
        bt = _pick_batch_tile(B, n)
    assert B % bt == 0
    rows = bt * n

    # Split duplicate projection: first d output features -> u, second d -> v.
    # Pre-transpose to (in, out) and pre-cast to bf16 (halves weight DMA bytes).
    w_u_t = jnp.asarray(w_dup[:d, :].T, dtype=jnp.bfloat16)      # (d, d)
    w_v_t = jnp.asarray(w_dup[d:, :].T, dtype=jnp.bfloat16)      # (d, d)
    b_u = b_dup[:d].reshape(1, d).astype(jnp.float32)
    b_v = b_dup[d:].reshape(1, d).astype(jnp.float32)
    gamma2 = gamma.reshape(1, d).astype(jnp.float32)
    beta2 = beta.reshape(1, d).astype(jnp.float32)
    w_dense_bf = jnp.asarray(w_dense, dtype=jnp.bfloat16)        # (n, n)
    # Fold "+1.0" into the token-mix bias and pre-broadcast lane-dense (n, d).
    b_dense_tile = jnp.broadcast_to(
        (b_dense + 1.0).reshape(n, 1), (n, d)).astype(jnp.float32)

    x2 = x.reshape(B * n, d)                                     # free metadata reshape

    kernel = functools.partial(_sgu_kernel, n_tokens=n)

    out2 = pl.pallas_call(
        kernel,
        out_shape=jax.ShapeDtypeStruct((B * n, d), x.dtype),
        grid_spec=pltpu.PrefetchScalarGridSpec(
            num_scalar_prefetch=0,
            grid=(B // bt,),
            in_specs=[
                pl.BlockSpec((rows, d), lambda i: (i, 0)),       # x slab
                pl.BlockSpec((d, d), lambda i: (0, 0)),          # W_v^T (bf16)
                pl.BlockSpec((1, d), lambda i: (0, 0)),          # b_v
                pl.BlockSpec((1, d), lambda i: (0, 0)),          # ln gamma
                pl.BlockSpec((1, d), lambda i: (0, 0)),          # ln beta
                pl.BlockSpec((n, n), lambda i: (0, 0)),          # W_dense (bf16)
                pl.BlockSpec((n, d), lambda i: (0, 0)),          # b_dense + 1 (lane-dense)
                pl.BlockSpec((d, d), lambda i: (0, 0)),          # W_u^T (bf16)
                pl.BlockSpec((1, d), lambda i: (0, 0)),          # b_u
            ],
            out_specs=pl.BlockSpec((rows, d), lambda i: (i, 0)),
        ),
        compiler_params=pltpu.CompilerParams(
            dimension_semantics=("parallel",),
            vmem_limit_bytes=_vmem_limit_bytes(rows, n, d)),
    )(x2, w_v_t, b_v, gamma2, beta2, w_dense_bf, b_dense_tile, w_u_t, b_u)

    return out2.reshape(B, n, d)


def sgu_reference(x, w_dup, b_dup, gamma, beta, w_dense, b_dense):
    """Pure f32 JAX reference matching the PyTorch module."""
    d = x.shape[-1]
    xd = x @ w_dup.T + b_dup
    u, v = xd[..., :d], xd[..., d:]
    mean = jnp.mean(v, axis=-1, keepdims=True)
    var = jnp.mean((v - mean) ** 2, axis=-1, keepdims=True)
    v = (v - mean) / jnp.sqrt(var + LN_EPS)
    v = v * gamma + beta
    v = jnp.einsum("ts,bsd->btd", w_dense, v) + b_dense[None, :, None] + 1.0
    return u * v


if __name__ == "__main__":
    B, n_tokens, dim = 2, 8, 32

    key = jax.random.PRNGKey(0)
    kx, k1, k2, k3, k4 = jax.random.split(key, 5)

    x = jax.random.normal(kx, (B, n_tokens, dim), dtype=jnp.float32)

    # duplicate = nn.Linear(dim, 2*dim): weight (2d, d), bias (2d,)
    w_dup = jax.random.normal(k1, (2 * dim, dim), dtype=jnp.float32) * 0.05
    b_dup = jax.random.normal(k2, (2 * dim,), dtype=jnp.float32) * 0.05
    # ln = nn.LayerNorm(dim): default init gamma=1, beta=0
    gamma = jnp.ones((dim,), dtype=jnp.float32)
    beta = jnp.zeros((dim,), dtype=jnp.float32)
    # dense = nn.Linear(n_tokens, n_tokens): weight (n, n), bias (n,)
    w_dense = jax.random.normal(k3, (n_tokens, n_tokens), dtype=jnp.float32) * 0.05
    b_dense = jax.random.normal(k4, (n_tokens,), dtype=jnp.float32) * 0.05

    out = spatial_gating_unit(x, w_dup, b_dup, gamma, beta, w_dense, b_dense)
    out = jax.block_until_ready(out)

    ref = sgu_reference(x, w_dup, b_dup, gamma, beta, w_dense, b_dense)
    assert out.shape == (B, n_tokens, dim)
    # Matmul operands run on the MXU in bf16 (accumulation + LayerNorm in f32),
    # so compare at bf16-level tolerance against the f32 reference.
    max_err = float(jnp.max(jnp.abs(out - ref)))
    assert jnp.allclose(out, ref, atol=2e-2, rtol=2e-2), max_err

    print("KERNEL_OK")
</pallas_src>

<mosaic_0001>
module attributes {stable_mosaic.version = 11 : i64} {
  func.func @_sgu_kernel(%arg0: i32, %arg1: memref<16x32xf32, #tpu.memory_space<vmem>>, %arg2: memref<32x32xbf16, #tpu.memory_space<vmem>>, %arg3: memref<1x32xf32, #tpu.memory_space<vmem>>, %arg4: memref<1x32xf32, #tpu.memory_space<vmem>>, %arg5: memref<1x32xf32, #tpu.memory_space<vmem>>, %arg6: memref<8x8xbf16, #tpu.memory_space<vmem>>, %arg7: memref<8x32xf32, #tpu.memory_space<vmem>>, %arg8: memref<32x32xbf16, #tpu.memory_space<vmem>>, %arg9: memref<1x32xf32, #tpu.memory_space<vmem>>, %arg10: memref<16x32xf32, #tpu.memory_space<vmem>>) attributes {dimension_semantics = [#tpu.dimension_semantics<parallel>], iteration_bounds = array<i64: 1>, scalar_prefetch = 0 : i64, scratch_operands = 0 : i64, tpu.core_type = #tpu.core_type<tc>, window_params = [{transform_indices = @transform_0, window_bounds = array<i64: 16, 32>}, {pipeline_mode = #tpu.pipeline_mode<synchronous>, transform_indices = @transform_1, window_bounds = array<i64: 32, 32>}, {pipeline_mode = #tpu.pipeline_mode<synchronous>, transform_indices = @transform_2, window_bounds = array<i64: 1, 32>}, {pipeline_mode = #tpu.pipeline_mode<synchronous>, transform_indices = @transform_3, window_bounds = array<i64: 1, 32>}, {pipeline_mode = #tpu.pipeline_mode<synchronous>, transform_indices = @transform_4, window_bounds = array<i64: 1, 32>}, {pipeline_mode = #tpu.pipeline_mode<synchronous>, transform_indices = @transform_5, window_bounds = array<i64: 8, 8>}, {pipeline_mode = #tpu.pipeline_mode<synchronous>, transform_indices = @transform_6, window_bounds = array<i64: 8, 32>}, {pipeline_mode = #tpu.pipeline_mode<synchronous>, transform_indices = @transform_7, window_bounds = array<i64: 32, 32>}, {pipeline_mode = #tpu.pipeline_mode<synchronous>, transform_indices = @transform_8, window_bounds = array<i64: 1, 32>}, {transform_indices = @transform_9, window_bounds = array<i64: 16, 32>}]} {
    %c0 = arith.constant 0 : index
    %c0_0 = arith.constant 0 : index
    %0 = vector.load %arg1[%c0, %c0_0] : memref<16x32xf32, #tpu.memory_space<vmem>>, vector<16x32xf32>
    %1 = arith.truncf %0 : vector<16x32xf32> to vector<16x32xbf16>
    %c0_1 = arith.constant 0 : index
    %c0_2 = arith.constant 0 : index
    %2 = vector.load %arg2[%c0_1, %c0_2] : memref<32x32xbf16, #tpu.memory_space<vmem>>, vector<32x32xbf16>
    %cst = arith.constant dense<0.000000e+00> : vector<16x32xf32>
    %3 = tpu.matmul %1, %2, %cst {dimension_numbers = #tpu.dot_dimension_numbers<[1], [0], [0], [1], [0, 0, 1, 1], [], []>} : vector<16x32xbf16>, vector<32x32xbf16>, vector<16x32xf32> -> vector<16x32xf32>
    %c0_3 = arith.constant 0 : index
    %c0_4 = arith.constant 0 : index
    %4 = vector.load %arg3[%c0_3, %c0_4] : memref<1x32xf32, #tpu.memory_space<vmem>>, vector<1x32xf32>
    %5 = vector.broadcast %4 : vector<1x32xf32> to vector<16x32xf32>
    %6 = arith.addf %3, %5 : vector<16x32xf32>
    %cst_5 = arith.constant dense<0.000000e+00> : vector<16xf32>
    %7 = vector.multi_reduction <add>, %6, %cst_5 [1] : vector<16x32xf32> to vector<16xf32>
    %8 = vector.shape_cast %7 : vector<16xf32> to vector<16x1xf32>
    %9 = arith.mulf %6, %6 : vector<16x32xf32>
    %cst_6 = arith.constant dense<0.000000e+00> : vector<16xf32>
    %10 = vector.multi_reduction <add>, %9, %cst_6 [1] : vector<16x32xf32> to vector<16xf32>
    %11 = vector.shape_cast %10 : vector<16xf32> to vector<16x1xf32>
    %cst_7 = arith.constant 3.125000e-02 : f32
    %12 = vector.broadcast %cst_7 : f32 to vector<16x1xf32>
    %13 = arith.mulf %8, %12 : vector<16x1xf32>
    %cst_8 = arith.constant 3.125000e-02 : f32
    %14 = vector.broadcast %cst_8 : f32 to vector<16x1xf32>
    %15 = arith.mulf %11, %14 : vector<16x1xf32>
    %16 = arith.mulf %13, %13 : vector<16x1xf32>
    %17 = arith.subf %15, %16 : vector<16x1xf32>
    %18 = vector.broadcast %13 : vector<16x1xf32> to vector<16x32xf32>
    %19 = arith.subf %6, %18 : vector<16x32xf32>
    %cst_9 = arith.constant 9.99999974E-6 : f32
    %20 = vector.broadcast %cst_9 : f32 to vector<16x1xf32>
    %21 = arith.addf %17, %20 : vector<16x1xf32>
    %22 = math.rsqrt %21 : vector<16x1xf32>
    %23 = vector.broadcast %22 : vector<16x1xf32> to vector<16x32xf32>
    %24 = arith.mulf %19, %23 : vector<16x32xf32>
    %c0_10 = arith.constant 0 : index
    %c0_11 = arith.constant 0 : index
    %25 = vector.load %arg4[%c0_10, %c0_11] : memref<1x32xf32, #tpu.memory_space<vmem>>, vector<1x32xf32>
    %26 = vector.broadcast %25 : vector<1x32xf32> to vector<16x32xf32>
    %27 = arith.mulf %24, %26 : vector<16x32xf32>
    %c0_12 = arith.constant 0 : index
    %c0_13 = arith.constant 0 : index
    %28 = vector.load %arg5[%c0_12, %c0_13] : memref<1x32xf32, #tpu.memory_space<vmem>>, vector<1x32xf32>
    %29 = vector.broadcast %28 : vector<1x32xf32> to vector<16x32xf32>
    %30 = arith.addf %27, %29 : vector<16x32xf32>
    %31 = arith.truncf %30 : vector<16x32xf32> to vector<16x32xbf16>
    %c0_14 = arith.constant 0 : index
    %c0_15 = arith.constant 0 : index
    %32 = vector.load %arg8[%c0_14, %c0_15] : memref<32x32xbf16, #tpu.memory_space<vmem>>, vector<32x32xbf16>
    %cst_16 = arith.constant dense<0.000000e+00> : vector<16x32xf32>
    %33 = tpu.matmul %1, %32, %cst_16 {dimension_numbers = #tpu.dot_dimension_numbers<[1], [0], [0], [1], [0, 0, 1, 1], [], []>} : vector<16x32xbf16>, vector<32x32xbf16>, vector<16x32xf32> -> vector<16x32xf32>
    %c0_17 = arith.constant 0 : index
    %c0_18 = arith.constant 0 : index
    %34 = vector.load %arg9[%c0_17, %c0_18] : memref<1x32xf32, #tpu.memory_space<vmem>>, vector<1x32xf32>
    %35 = vector.broadcast %34 : vector<1x32xf32> to vector<16x32xf32>
    %36 = arith.addf %33, %35 : vector<16x32xf32>
    %c0_19 = arith.constant 0 : index
    %c0_20 = arith.constant 0 : index
    %37 = vector.load %arg6[%c0_19, %c0_20] : memref<8x8xbf16, #tpu.memory_space<vmem>>, vector<8x8xbf16>
    %c0_21 = arith.constant 0 : index
    %c0_22 = arith.constant 0 : index
    %38 = vector.load %arg7[%c0_21, %c0_22] : memref<8x32xf32, #tpu.memory_space<vmem>>, vector<8x32xf32>
    %39 = vector.extract_strided_slice %31 {offsets = [0, 0], sizes = [8, 32], strides = [1, 1]} : vector<16x32xbf16> to vector<8x32xbf16>
    %cst_23 = arith.constant dense<0.000000e+00> : vector<8x32xf32>
    %40 = tpu.matmul %37, %39, %cst_23 {dimension_numbers = #tpu.dot_dimension_numbers<[1], [0], [0], [1], [0, 0, 1, 1], [], []>} : vector<8x8xbf16>, vector<8x32xbf16>, vector<8x32xf32> -> vector<8x32xf32>
    %41 = arith.addf %40, %38 : vector<8x32xf32>
    %42 = vector.extract_strided_slice %36 {offsets = [0, 0], sizes = [8, 32], strides = [1, 1]} : vector<16x32xf32> to vector<8x32xf32>
    %43 = arith.mulf %42, %41 : vector<8x32xf32>
    %c0_24 = arith.constant 0 : index
    %c0_25 = arith.constant 0 : index
    %44 = vector.load %arg10[%c0_24, %c0_25] : memref<16x32xf32, #tpu.memory_space<vmem>>, vector<8x32xf32>
    tpu.vector_store %arg10[%c0_24, %c0_25], %43 {strides = array<i32>} : memref<16x32xf32, #tpu.memory_space<vmem>>, vector<8x32xf32>,
    %45 = vector.extract_strided_slice %31 {offsets = [8, 0], sizes = [8, 32], strides = [1, 1]} : vector<16x32xbf16> to vector<8x32xbf16>
    %cst_26 = arith.constant dense<0.000000e+00> : vector<8x32xf32>
    %46 = tpu.matmul %37, %45, %cst_26 {dimension_numbers = #tpu.dot_dimension_numbers<[1], [0], [0], [1], [0, 0, 1, 1], [], []>} : vector<8x8xbf16>, vector<8x32xbf16>, vector<8x32xf32> -> vector<8x32xf32>
    %47 = arith.addf %46, %38 : vector<8x32xf32>
    %48 = vector.extract_strided_slice %36 {offsets = [8, 0], sizes = [8, 32], strides = [1, 1]} : vector<16x32xf32> to vector<8x32xf32>
    %49 = arith.mulf %48, %47 : vector<8x32xf32>
    %c8 = arith.constant 8 : index
    %c0_27 = arith.constant 0 : index
    %50 = vector.load %arg10[%c8, %c0_27] : memref<16x32xf32, #tpu.memory_space<vmem>>, vector<8x32xf32>
    tpu.vector_store %arg10[%c8, %c0_27], %49 {strides = array<i32>} : memref<16x32xf32, #tpu.memory_space<vmem>>, vector<8x32xf32>,
    return
  }
  func.func @transform_0(%arg0: i32) -> (i32, i32) {
    %c0_i32 = arith.constant 0 : i32
    %c0_i32_0 = arith.constant 0 : i32
    return %arg0, %c0_i32 : i32, i32
  }
  func.func @transform_1(%arg0: i32) -> (i32, i32) {
    %c0_i32 = arith.constant 0 : i32
    %c0_i32_0 = arith.constant 0 : i32
    %c0_i32_1 = arith.constant 0 : i32
    return %c0_i32, %c0_i32_0 : i32, i32
  }
  func.func @transform_2(%arg0: i32) -> (i32, i32) {
    %c0_i32 = arith.constant 0 : i32
    %c0_i32_0 = arith.constant 0 : i32
    %c0_i32_1 = arith.constant 0 : i32
    return %c0_i32, %c0_i32_0 : i32, i32
  }
  func.func @transform_3(%arg0: i32) -> (i32, i32) {
    %c0_i32 = arith.constant 0 : i32
    %c0_i32_0 = arith.constant 0 : i32
    %c0_i32_1 = arith.constant 0 : i32
    return %c0_i32, %c0_i32_0 : i32, i32
  }
  func.func @transform_4(%arg0: i32) -> (i32, i32) {
    %c0_i32 = arith.constant 0 : i32
    %c0_i32_0 = arith.constant 0 : i32
    %c0_i32_1 = arith.constant 0 : i32
    return %c0_i32, %c0_i32_0 : i32, i32
  }
  func.func @transform_5(%arg0: i32) -> (i32, i32) {
    %c0_i32 = arith.constant 0 : i32
    %c0_i32_0 = arith.constant 0 : i32
    %c0_i32_1 = arith.constant 0 : i32
    return %c0_i32, %c0_i32_0 : i32, i32
  }
  func.func @transform_6(%arg0: i32) -> (i32, i32) {
    %c0_i32 = arith.constant 0 : i32
    %c0_i32_0 = arith.constant 0 : i32
    %c0_i32_1 = arith.constant 0 : i32
    return %c0_i32, %c0_i32_0 : i32, i32
  }
  func.func @transform_7(%arg0: i32) -> (i32, i32) {
    %c0_i32 = arith.constant 0 : i32
    %c0_i32_0 = arith.constant 0 : i32
    %c0_i32_1 = arith.constant 0 : i32
    return %c0_i32, %c0_i32_0 : i32, i32
  }
  func.func @transform_8(%arg0: i32) -> (i32, i32) {
    %c0_i32 = arith.constant 0 : i32
    %c0_i32_0 = arith.constant 0 : i32
    %c0_i32_1 = arith.constant 0 : i32
    return %c0_i32, %c0_i32_0 : i32, i32
  }
  func.func @transform_9(%arg0: i32) -> (i32, i32) {
    %c0_i32 = arith.constant 0 : i32
    %c0_i32_0 = arith.constant 0 : i32
    return %arg0, %c0_i32 : i32, i32
  }
}

</mosaic_0001>

<llo_original>
// kernel: tpu_custom_call.1
$region0: #{tpu_custom_call.1}
  #allocation0 [shape = 'u32[]', space=smem, size = 0x4, offset = 0x4, fixed_abs, tag = 'smem constant byte address 0x4 - core index']
  #allocation1 [shape = 'u32[72,128]{1,0:T(1,128)}', space=vmem, size = 0x9000, scoped, tag = 'internal scratch']
  %s0 = inlined_call_operand.hbm [shape: f32[16,32], index: 0, kind: input, shape index: {}]
  %s1 = inlined_call_operand.hbm [shape: bf16[32,32], index: 1, kind: input, shape index: {}]
  %s2 = inlined_call_operand.hbm [shape: f32[1,32], index: 2, kind: input, shape index: {}]
  %s3 = inlined_call_operand.hbm [shape: f32[1,32], index: 3, kind: input, shape index: {}]
  %s4 = inlined_call_operand.hbm [shape: f32[1,32], index: 4, kind: input, shape index: {}]
  %s5 = inlined_call_operand.vmem [shape: bf16[8,8], index: 5, kind: input, shape index: {}]
  %s6 = inlined_call_operand.hbm [shape: f32[8,32], index: 6, kind: input, shape index: {}]
  %s7 = inlined_call_operand.hbm [shape: bf16[32,32], index: 7, kind: input, shape index: {}]
  %s8 = inlined_call_operand.vmem [shape: f32[1,32], index: 8, kind: input, shape index: {}]
  %s9 = inlined_call_operand.hbm [shape: f32[16,32], index: 9, kind: output, shape index: {}]
  %s10 = sld [smem:[#allocation0]]
  $region74: #{tpu_custom_call.1} parent=0
    _
  %s12 = ssub.s32 1, %s10
  %s13 = scalar_select 0, %s12, %s10
  $region1: #{tpu_custom_call.1} parent=0
    #allocation2 [shape = 'u8[8192]{0}', space=vmem, size = 0x2000, scoped, tag = 'input window, operand 0, single buffered']
    #allocation3 [shape = 's32[1]{0}', space=sflag, size = 0x4, scoped, tag = 'scoped memory for tpu_custom_call.1']
    #allocation4 [shape = 's32[1]{0}', space=sflag, size = 0x4, scoped, tag = 'scoped memory for tpu_custom_call.1']
    #allocation5 [shape = 'u8[8192]{0}', space=vmem, size = 0x2000, scoped, tag = 'input window, operand 1, single buffered']
    #allocation6 [shape = 's32[1]{0}', space=sflag, size = 0x4, scoped, tag = 'scoped memory for tpu_custom_call.1']
    #allocation7 [shape = 'u8[512]{0}', space=vmem, size = 0x400, scoped, tag = 'input window, operand 2, single buffered']
    #allocation8 [shape = 'u8[512]{0}', space=vmem, size = 0x400, scoped, tag = 'input window, operand 3, single buffered']
    #allocation9 [shape = 's32[1]{0}', space=sflag, size = 0x4, scoped, tag = 'scoped memory for tpu_custom_call.1']
    #allocation10 [shape = 'u8[512]{0}', space=vmem, size = 0x400, scoped, tag = 'input window, operand 4, single buffered']
    #allocation11 [shape = 'u8[4096]{0}', space=vmem, size = 0x1000, scoped, tag = 'input window, operand 6, single buffered']
    #allocation12 [shape = 's32[1]{0}', space=sflag, size = 0x4, scoped, tag = 'scoped memory for tpu_custom_call.1']
    #allocation13 [shape = 'u8[8192]{0}', space=vmem, size = 0x2000, scoped, tag = 'input window, operand 7, single buffered']
    #allocation14 [shape = 'u8[8192]{0}', space=vmem, size = 0x2000, scoped, tag = 'output window, operand 0, single buffered']
    %14 = vsyncpa [#allocation3], 0
    %15 = vsyncpa [#allocation6], 0
    %16 = vsyncpa [#allocation9], 0
    %17 = vsyncpa [#allocation12], 0
    %18 = vsyncpa [#allocation4], 0
    // Predicated region
    $region2: #{tpu_custom_call.1} parent=1 // pred_check
      _
    $region3: #{tpu_custom_call.1} parent=1 // pred_check_branch
      %20 = sbr.rel (0) target = $region5
    $region4: #{tpu_custom_call.1} parent=1 // pred_region
      %22 = vsyncadd [#allocation3], 0
      %s23 = sshll.u32 %s0, 4
      %s24 = int_to_ptr.hbm [resolvable:$true] %s23
      %s25 = sshll.u32 [#allocation2], 4
      %s26 = int_to_ptr.vmem [resolvable:$true] %s25
      %31 = dma.hbm_to_vmem [thread:$0]  %s24, 256, %s26, [#allocation3], 128, 128, 8
    $region5: #{tpu_custom_call.1} parent=1 // pred_fallthru
      _
    // Predicated region
    $region6: #{tpu_custom_call.1} parent=1 // pred_check
      _
    $region7: #{tpu_custom_call.1} parent=1 // pred_check_branch
      %33 = sbr.rel (0) target = $region9
    $region8: #{tpu_custom_call.1} parent=1 // pred_region
      %35 = vsyncadd [#allocation6], 0
      %s36 = sshll.u32 %s1, 4
      %s37 = int_to_ptr.hbm [resolvable:$true] %s36
      %s38 = sshll.u32 [#allocation5], 4
      %s39 = int_to_ptr.vmem [resolvable:$true] %s38
      %44 = dma.hbm_to_vmem [thread:$0]  %s37, 256, %s39, [#allocation6], 64, 64, 4
    $region9: #{tpu_custom_call.1} parent=1 // pred_fallthru
      _
    // Predicated region
    $region10: #{tpu_custom_call.1} parent=1 // pred_check
      _
    $region11: #{tpu_custom_call.1} parent=1 // pred_check_branch
      %46 = sbr.rel (0) target = $region13
    $region12: #{tpu_custom_call.1} parent=1 // pred_region
      %48 = vsyncadd [#allocation6], 0
      %s50 = sshll.u32 %s2, 4
      %s51 = int_to_ptr.hbm [resolvable:$true] %s50
      %s52 = sshll.u32 [#allocation7], 4
      %s53 = int_to_ptr.vmem [resolvable:$true] %s52
      %55 = dma.hbm_to_vmem [thread:$0]  %s51, 16, %s53, [#allocation6]
    $region13: #{tpu_custom_call.1} parent=1 // pred_fallthru
      _
    // Predicated region
    $region14: #{tpu_custom_call.1} parent=1 // pred_check
      _
    $region15: #{tpu_custom_call.1} parent=1 // pred_check_branch
      %57 = sbr.rel (0) target = $region17
    $region16: #{tpu_custom_call.1} parent=1 // pred_region
      %59 = vsyncadd [#allocation9], 0
      %s61 = sshll.u32 %s3, 4
      %s62 = int_to_ptr.hbm [resolvable:$true] %s61
      %s63 = sshll.u32 [#allocation8], 4
      %s64 = int_to_ptr.vmem [resolvable:$true] %s63
      %66 = dma.hbm_to_vmem [thread:$0]  %s62, 16, %s64, [#allocation9]
    $region17: #{tpu_custom_call.1} parent=1 // pred_fallthru
      _
    // Predicated region
    $region18: #{tpu_custom_call.1} parent=1 // pred_check
      _
    $region19: #{tpu_custom_call.1} parent=1 // pred_check_branch
      %68 = sbr.rel (0) target = $region21
    $region20: #{tpu_custom_call.1} parent=1 // pred_region
      %70 = vsyncadd [#allocation9], 0
      %s72 = sshll.u32 %s4, 4
      %s73 = int_to_ptr.hbm [resolvable:$true] %s72
      %s74 = sshll.u32 [#allocation10], 4
      %s75 = int_to_ptr.vmem [resolvable:$true] %s74
      %77 = dma.hbm_to_vmem [thread:$0]  %s73, 16, %s75, [#allocation9]
    $region21: #{tpu_custom_call.1} parent=1 // pred_fallthru
      _
    // Predicated region
    $region22: #{tpu_custom_call.1} parent=1 // pred_check
      _
    $region23: #{tpu_custom_call.1} parent=1 // pred_check_branch
      %79 = sbr.rel (0) target = $region25
    $region24: #{tpu_custom_call.1} parent=1 // pred_region
      _
    $region25: #{tpu_custom_call.1} parent=1 // pred_fallthru
      _
    // Predicated region
    $region26: #{tpu_custom_call.1} parent=1 // pred_check
      _
    $region27: #{tpu_custom_call.1} parent=1 // pred_check_branch
      %81 = sbr.rel (0) target = $region29
    $region28: #{tpu_custom_call.1} parent=1 // pred_region
      %83 = vsyncadd [#allocation12], 0
      %s85 = sshll.u32 %s6, 4
      %s86 = int_to_ptr.hbm [resolvable:$true] %s85
      %s87 = sshll.u32 [#allocation11], 4
      %s88 = int_to_ptr.vmem [resolvable:$true] %s87
      %90 = dma.hbm_to_vmem [thread:$0]  %s86, 128, %s88, [#allocation12]
    $region29: #{tpu_custom_call.1} parent=1 // pred_fallthru
      _
    // Predicated region
    $region30: #{tpu_custom_call.1} parent=1 // pred_check
      _
    $region31: #{tpu_custom_call.1} parent=1 // pred_check_branch
      %92 = sbr.rel (0) target = $region33
    $region32: #{tpu_custom_call.1} parent=1 // pred_region
      %94 = vsyncadd [#allocation12], 0
      %s95 = sshll.u32 %s7, 4
      %s96 = int_to_ptr.hbm [resolvable:$true] %s95
      %s97 = sshll.u32 [#allocation13], 4
      %s98 = int_to_ptr.vmem [resolvable:$true] %s97
      %103 = dma.hbm_to_vmem [thread:$0]  %s96, 256, %s98, [#allocation12], 64, 64, 4
    $region33: #{tpu_custom_call.1} parent=1 // pred_fallthru
      _
    // Predicated region
    $region34: #{tpu_custom_call.1} parent=1 // pred_check
      _
    $region35: #{tpu_custom_call.1} parent=1 // pred_check_branch
      %105 = sbr.rel (0) target = $region37
    $region36: #{tpu_custom_call.1} parent=1 // pred_region
      _
    $region37: #{tpu_custom_call.1} parent=1 // pred_fallthru
      _
    // Predicated region
    $region38: #{tpu_custom_call.1} parent=1 // pred_check
      _
    $region39: #{tpu_custom_call.1} parent=1 // pred_check_branch
      %107 = sbr.rel (0) target = $region41
    $region40: #{tpu_custom_call.1} parent=1 // pred_region
      %109 = dma.done [#allocation3], 256
    $region41: #{tpu_custom_call.1} parent=1 // pred_fallthru
      _
    // Predicated region
    $region42: #{tpu_custom_call.1} parent=1 // pred_check
      _
    $region43: #{tpu_custom_call.1} parent=1 // pred_check_branch
      %111 = sbr.rel (0) target = $region45
    $region44: #{tpu_custom_call.1} parent=1 // pred_region
      %113 = dma.done [#allocation6], 256
    $region45: #{tpu_custom_call.1} parent=1 // pred_fallthru
      _
    // Predicated region
    $region46: #{tpu_custom_call.1} parent=1 // pred_check
      _
    $region47: #{tpu_custom_call.1} parent=1 // pred_check_branch
      %115 = sbr.rel (0) target = $region49
    $region48: #{tpu_custom_call.1} parent=1 // pred_region
      %117 = dma.done [#allocation6], 16
    $region49: #{tpu_custom_call.1} parent=1 // pred_fallthru
      _
    // Predicated region
    $region50: #{tpu_custom_call.1} parent=1 // pred_check
      _
    $region51: #{tpu_custom_call.1} parent=1 // pred_check_branch
      %119 = sbr.rel (0) target = $region53
    $region52: #{tpu_custom_call.1} parent=1 // pred_region
      %121 = dma.done [#allocation9], 16
    $region53: #{tpu_custom_call.1} parent=1 // pred_fallthru
      _
    // Predicated region
    $region54: #{tpu_custom_call.1} parent=1 // pred_check
      _
    $region55: #{tpu_custom_call.1} parent=1 // pred_check_branch
      %123 = sbr.rel (0) target = $region57
    $region56: #{tpu_custom_call.1} parent=1 // pred_region
      %125 = dma.done [#allocation9], 16
    $region57: #{tpu_custom_call.1} parent=1 // pred_fallthru
      _
    // Predicated region
    $region58: #{tpu_custom_call.1} parent=1 // pred_check
      _
    $region59: #{tpu_custom_call.1} parent=1 // pred_check_branch
      %127 = sbr.rel (0) target = $region61
    $region60: #{tpu_custom_call.1} parent=1 // pred_region
      %129 = dma.done [#allocation12], 128
    $region61: #{tpu_custom_call.1} parent=1 // pred_fallthru
      _
    // Predicated region
    $region62: #{tpu_custom_call.1} parent=1 // pred_check
      _
    $region63: #{tpu_custom_call.1} parent=1 // pred_check_branch
      %131 = sbr.rel (0) target = $region65
    $region64: #{tpu_custom_call.1} parent=1 // pred_region
      %133 = dma.done [#allocation12], 256
    $region65: #{tpu_custom_call.1} parent=1 // pred_fallthru
      _
    %v135 = vld [vmem:[#allocation2] sm:$0xff]
    %v136 = vld [vmem:[#allocation2 + $0x8] sm:$0xff]
    %v137 = vpack.c.bf16 %v136, %v135
    %v138 = vld [vmem:[#allocation5] sm:$0xf]
    %v139 = vld [vmem:[#allocation5 + $0x4] sm:$0xf]
    %v140 = vld [vmem:[#allocation5 + $0x8] sm:$0xf]
    %v141 = vld [vmem:[#allocation5 + $0xc] sm:$0xf]
    %v142 = vld [vmem:[#allocation7] sm:$0x1]
    %v144 = vperm.slane %v142, 0
    %v150 = vunpack.c.l.b16 %v138
    %v151 = vunpack.c.l.b16 %v139
    %v152 = vunpack.c.l.b16 %v140
    %v153 = vunpack.c.l.b16 %v141
    %v154 = vpack.c.b16 %v151, %v150
    %v155 = vpack.c.b16 %v153, %v152
    %vm158 = vcmask 261120
    %v160 = vsel %vm158, %v137, 0
    %162 = vmatpush.bf16.msra.mxu0 0
    %163 = vmatpush.bf16.msra.mxu0 0
    %164 = vmatpush.bf16.msra.mxu0 0
    %165 = vmatpush.bf16.msra.mxu0 0
    %166 = vmatpush.bf16.msra.mxu0 0
    %167 = vmatpush.bf16.msra.mxu0 0
    %168 = vmatpush.bf16.msra.mxu0 %v155
    %169 = vmatpush.bf16.msra.mxu0 %v154
    %170 = vmatmul.bf16.gmra.mxu0 %v160
    %v171 = vpop.f32.mrf.mxu0
    %v172 = vadd.f32 %v144, %v171
    %v173 = vpop.f32.mrf.mxu0
    %v174 = vadd.f32 %v144, %v173
    %175 = vdwg.mxu0
    %v176 = vsel %vm158, %v172, 0.0
    %177 = vadd.xlane.f32.xlu0 %v176
    %v178 = vpop.xlane.xlu0 %177
    %v179 = vsel %vm158, %v174, 0.0
    %180 = vadd.xlane.f32.xlu0 %v179
    %v181 = vpop.xlane.xlu0 %180
    %v182 = vmul.f32 %v172, %v172
    %v183 = vmul.f32 %v174, %v174
    %v184 = vsel %vm158, %v182, 0.0
    %185 = vadd.xlane.f32.xlu0 %v184
    %v186 = vpop.xlane.xlu0 %185
    %v187 = vsel %vm158, %v183, 0.0
    %188 = vadd.xlane.f32.xlu0 %v187
    %v189 = vpop.xlane.xlu0 %188
    %v190 = vmul.f32 %v178, 0.03125
    %v191 = vmul.f32 %v181, 0.03125
    %v192 = vmul.f32 %v186, 0.03125
    %v193 = vmul.f32 %v189, 0.03125
    %v194 = vmul.f32 %v190, %v190
    %v195 = vmul.f32 %v191, %v191
    %v196 = vsub.f32 %v192, %v194
    %v197 = vsub.f32 %v193, %v195
    %v198 = vsub.f32 %v172, %v190
    %v199 = vsub.f32 %v174, %v191
    %v200 = vadd.f32 %v196, 1e-05
    %v201 = vadd.f32 %v197, 1e-05
    %v202 = vrsqrt.pop %v200
    %v203 = vmul.f32 %v202, %v200
    %v204 = vmul.f32 %v203, %v202
    %v205 = vmul.f32 0.5, %v204
    %v206 = vsub.f32 1.5, %v205
    %v207 = vmul.f32 %v202, %v206
    %vm208 = vweird.f32 %v200
    %vm209 = vweird.f32 %v202
    %vm210 = vmor %vm208, %vm209
    %v211 = vsel %vm210, %v202, %v207
    %v212 = vrsqrt.pop %v201
    %v213 = vmul.f32 %v212, %v201
    %v214 = vmul.f32 %v213, %v212
    %v215 = vmul.f32 0.5, %v214
    %v216 = vsub.f32 1.5, %v215
    %v217 = vmul.f32 %v212, %v216
    %vm218 = vweird.f32 %v201
    %vm219 = vweird.f32 %v212
    %vm220 = vmor %vm218, %vm219
    %v221 = vsel %vm220, %v212, %v217
    %v222 = vmul.f32 %v198, %v211
    %v223 = vmul.f32 %v199, %v221
    %v224 = vld [vmem:[#allocation8] sm:$0x1]
    %v226 = vperm.slane %v224, 0
    %v228 = vmul.f32 %v222, %v226
    %v229 = vmul.f32 %v223, %v226
    %v230 = vld [vmem:[#allocation10] sm:$0x1]
    %v232 = vperm.slane %v230, 0
    %v234 = vadd.f32 %v228, %v232
    %v235 = vadd.f32 %v229, %v232
    %v236 = vpack.c.bf16 %v234, %v234
    %v237 = vpack.c.bf16 %v235, %v235
    %v238 = vld [vmem:[#allocation13] sm:$0xf]
    %v239 = vld [vmem:[#allocation13 + $0x4] sm:$0xf]
    %v240 = vld [vmem:[#allocation13 + $0x8] sm:$0xf]
    %v241 = vld [vmem:[#allocation13 + $0xc] sm:$0xf]
    %v242 = vld [vmem:[%s8] sm:$0x1]
    %v244 = vperm.slane %v242, 0
    %v250 = vunpack.c.l.b16 %v238
    %v251 = vunpack.c.l.b16 %v239
    %v252 = vunpack.c.l.b16 %v240
    %v253 = vunpack.c.l.b16 %v241
    %v254 = vpack.c.b16 %v251, %v250
    %v255 = vpack.c.b16 %v253, %v252
    %258 = vmatpush.bf16.msra.mxu0 0
    %259 = vmatpush.bf16.msra.mxu0 0
    %260 = vmatpush.bf16.msra.mxu0 0
    %261 = vmatpush.bf16.msra.mxu0 0
    %262 = vmatpush.bf16.msra.mxu0 0
    %263 = vmatpush.bf16.msra.mxu0 0
    %264 = vmatpush.bf16.msra.mxu0 %v255
    %265 = vmatpush.bf16.msra.mxu0 %v254
    %266 = vmatmul.bf16.gmra.mxu0 %v160
    %v267 = vpop.f32.mrf.mxu0
    %v268 = vadd.f32 %v244, %v267
    %v269 = vpop.f32.mrf.mxu0
    %v270 = vadd.f32 %v244, %v269
    %271 = vdwg.mxu0
    %v272 = vld [vmem:[%s5] sm:$0xf]
    %v273 = vld [vmem:[#allocation11] sm:$0xff]
    %vm274 = vcmask 64512
    %v276 = vsel %vm274, %v272, 0
    %vm278 = vcmask 1043456
    %v280 = vsel %vm278, %v236, 0
    %282 = vmatpush.bf16.msra.mxu0 0
    %283 = vmatpush.bf16.msra.mxu0 0
    %284 = vmatpush.bf16.msra.mxu0 0
    %285 = vmatpush.bf16.msra.mxu0 0
    %286 = vmatpush.bf16.msra.mxu0 0
    %287 = vmatpush.bf16.msra.mxu0 0
    %288 = vmatpush.bf16.msra.mxu0 0
    %289 = vmatpush.bf16.msra.mxu0 %v280
    %290 = vmatmul.bf16.gmra.mxu0 %v276
    %v291 = vpop.f32.mrf.mxu0
    %v292 = vadd.f32 %v273, %v291
    %v293 = vpop.f32.mrf.mxu0
    %294 = vdwg.mxu0
    %v295 = vmul.f32 %v268, %v292
    %296 = vst.msk [vmem:[#allocation14] sm:$0xff] %vm158, %v295
    %v298 = vsel %vm278, %v237, 0
    %300 = vmatpush.bf16.msra.mxu0 0
    %301 = vmatpush.bf16.msra.mxu0 0
    %302 = vmatpush.bf16.msra.mxu0 0
    %303 = vmatpush.bf16.msra.mxu0 0
    %304 = vmatpush.bf16.msra.mxu0 0
    %305 = vmatpush.bf16.msra.mxu0 0
    %306 = vmatpush.bf16.msra.mxu0 0
    %307 = vmatpush.bf16.msra.mxu0 %v298
    %308 = vmatmul.bf16.gmra.mxu0 %v276
    %v309 = vpop.f32.mrf.mxu0
    %v310 = vadd.f32 %v273, %v309
    %v311 = vpop.f32.mrf.mxu0
    %312 = vdwg.mxu0
    %v313 = vmul.f32 %v270, %v310
    %314 = vst.msk [vmem:[#allocation14 + $0x8] sm:$0xff] %vm158, %v313
    // Predicated region
    $region66: #{tpu_custom_call.1} parent=1 // pred_check
      _
    $region67: #{tpu_custom_call.1} parent=1 // pred_check_branch
      %316 = sbr.rel (0) target = $region69
    $region68: #{tpu_custom_call.1} parent=1 // pred_region
      %318 = vsyncadd [#allocation4], 0
      %s319 = sshll.u32 [#allocation14], 4
      %s320 = int_to_ptr.vmem [resolvable:$true] %s319
      %s321 = sshll.u32 %s9, 4
      %s322 = int_to_ptr.hbm [resolvable:$true] %s321
      %327 = dma.vmem_to_hbm [thread:$0]  %s320, 256, %s322, [#allocation4], 128, 128, 8
    $region69: #{tpu_custom_call.1} parent=1 // pred_fallthru
      _
    // Predicated region
    $region70: #{tpu_custom_call.1} parent=1 // pred_check
      _
    $region71: #{tpu_custom_call.1} parent=1 // pred_check_branch
      %329 = sbr.rel (0) target = $region73
    $region72: #{tpu_custom_call.1} parent=1 // pred_region
      %331 = dma.done [#allocation4], 256
    $region73: #{tpu_custom_call.1} parent=1 // pred_fallthru
      _
    %332 = vsyncpa [#allocation3], 1
    %333 = vsyncpa [#allocation6], 1
    %334 = vsyncpa [#allocation9], 1
    %335 = vsyncpa [#allocation12], 1
    %336 = vsyncpa [#allocation4], 1

</llo_original>
